<compile_context>
chip_gen: v5e
topology: v5e:2x2
jax: 0.10.0
libtpu: 0.0.40
codegen_flags: <defaults>
</compile_context>

<pallas_src>
import functools

import jax
import jax.numpy as jnp
from jax import lax
from jax.experimental import pallas as pl
from jax.experimental.pallas import tpu as pltpu

_NEG = -1e30  # "minus infinity" for masked columns (exp underflows to exactly 0)


def _round_up(v, m):
    return (v + m - 1) // m * m


def _vmem_capacity_bytes():
    """Physical VMEM of the attached TPU; conservative (v7x-sized) fallback."""
    try:
        cap = int(pltpu.get_tpu_info().vmem_capacity_bytes)
    except Exception:
        cap = 0
    if cap <= 0:
        cap = 64 * 1024 * 1024
    return cap


def _softmax_groups(logits, groups):
    """Independent exact softmax over each column range in `groups` (lane-masked)."""
    col = lax.broadcasted_iota(jnp.int32, logits.shape, 1)
    probs = jnp.zeros_like(logits)
    for lo, hi in groups:
        in_g = (col >= lo) & (col < hi)
        lg = jnp.where(in_g, logits, _NEG)
        m = jnp.max(lg, axis=-1, keepdims=True)
        e = jnp.exp(lg - m)                       # masked cols -> exp(-1e30) == 0
        s = jnp.sum(e, axis=-1, keepdims=True)    # >= 1, never zero
        probs = jnp.where(in_g, e / s, probs)     # exact normalization (f32 divide)
    return probs


def _epilogue_store(o_ref, logits, bias, groups):
    """Per-group softmax of (logits + bias), written in <=128-row slabs."""
    tm = logits.shape[0]
    step = 128 if tm > 128 else tm
    for r0 in range(0, tm, step):
        o_ref[r0:r0 + step, :] = _softmax_groups(logits[r0:r0 + step, :] + bias, groups)


def _ensemble_kernel_1d(x_ref, w_ref, b_ref, o_ref, *, groups):
    """grid = (M blocks,).  D collapsed -> [W | W_flip] stays VMEM-resident.

    x_ref : (tM, D_pad)    bf16  crop rows (all crops stacked along M)
    w_ref : (D_pad, Ktot)  bf16  [W | W_flip]   (constant block index -> resident)
    b_ref : (1,  Ktot)     f32   bias
    o_ref : (tM, Ktot)     f32   per-group softmax probabilities
    """
    acc = jnp.dot(x_ref[...], w_ref[...], preferred_element_type=jnp.float32)
    _epilogue_store(o_ref, acc, b_ref[...], groups)


def _ensemble_kernel_2d(x_ref, w_ref, b_ref, o_ref, *, groups, n_d):
    """grid = (M blocks [parallel], D blocks [arbitrary]) fallback for large D."""
    d = pl.program_id(1)
    part = jnp.dot(x_ref[...], w_ref[...], preferred_element_type=jnp.float32)

    @pl.when(d == 0)
    def _():
        o_ref[...] = part          # overwrite: no zero-init store + load/add

    @pl.when(d > 0)
    def _():
        o_ref[...] += part

    @pl.when(d == n_d - 1)
    def _():
        _epilogue_store(o_ref, o_ref[...], b_ref[...], groups)


def multicrop_ensemble(x, W, b, cropsize, flipping=True, d_block_cap=None):
    """x: (N, C, H, Wd) f32; W: (C*cs*cs, K); b: (K,) or (1, K). Returns (N, K) f32."""
    x = jnp.asarray(x, jnp.float32)
    W = jnp.asarray(W, jnp.float32)
    b = jnp.asarray(b, jnp.float32).reshape(1, -1)

    N, C, H, Wd = x.shape
    cs = int(cropsize)
    assert H >= cs and Wd >= cs
    D = C * cs * cs
    K = W.shape[1]
    assert W.shape[0] == D and b.shape[1] == K

    x1, x2, cx = 0, H - cs, H // 2 - cs // 2
    y1, y2, cy = 0, Wd - cs, Wd // 2 - cs // 2
    crop_offsets = [(x1, y1), (x1, y2), (x2, y1), (x2, y2), (cx, cy)]

    # ---- fold the horizontal flip into the classifier weights --------------------
    extra_center = False
    if flipping:
        # flip_w(crop) @ W == crop @ W_flip (rows of W permuted by the in-crop flip)
        W_flip = W.reshape(C, cs, cs, K)[:, :, ::-1, :].reshape(D, K)
        if 2 * K <= 128:
            # small-K packing: both groups share one 128-lane column tile
            Ktot = 128
            W_eff = jnp.pad(jnp.concatenate([W, W_flip], axis=1),
                            ((0, 0), (0, Ktot - 2 * K)))
            b_eff = jnp.pad(jnp.concatenate([b, b], axis=1),
                            ((0, 0), (0, Ktot - 2 * K)))
            groups = ((0, K), (K, 2 * K))
        else:
            Kp = _round_up(K, 128)
            Ktot = 2 * Kp
            W_eff = jnp.concatenate([jnp.pad(W, ((0, 0), (0, Kp - K))),
                                     jnp.pad(W_flip, ((0, 0), (0, Kp - K)))], axis=1)
            b_eff = jnp.concatenate([jnp.pad(b, ((0, 0), (0, Kp - K)))] * 2, axis=1)
            groups = ((0, K), (Kp, Kp + K))
        # crop of the flipped image at column y == flip_w(original crop at Wd-cs-y);
        # corners mirror onto themselves, the center may shift by one pixel.
        cy_m = Wd - cs - cy
        if cy_m != cy:
            extra_center = True
            crop_offsets.append((cx, cy_m))
    else:
        Ktot = _round_up(K, 128)
        W_eff = jnp.pad(W, ((0, 0), (0, Ktot - K)))
        b_eff = jnp.pad(b, ((0, 0), (0, Ktot - K)))
        groups = ((0, K),)

    nc = len(crop_offsets)
    M = nc * N

    # ---- generation-aware VMEM budget and tile sizes ------------------------------
    cap = _vmem_capacity_bytes()                      # 128 MiB v5e/v6e, 64 MiB v7x
    budget = min(cap * 3 // 5, 96 * 1024 * 1024)

    if M >= 256:
        tM = 256                                      # fill 256-row MXU on v6e/v7x
    elif M >= 128:
        tM = 128
    else:
        tM = _round_up(M, 16)                         # bf16 sublane packing minimum

    def vmem_bytes(tm, td):
        return (2 * tm * td * 2          # crop tiles, bf16, double buffered
                + 2 * td * Ktot * 2      # weight tiles, bf16, double buffered
                + 2 * tm * Ktot * 4      # f32 output tile
                + 2 * Ktot * 4)          # bias

    # Prefer collapsing the reduction axis entirely -> weights stay VMEM-resident.
    tD = _round_up(D, 128)
    if d_block_cap is not None:
        tD = min(tD, _round_up(int(d_block_cap), 128))
    while vmem_bytes(tM, tD) > budget and tD > 128:
        tD = max(128, _round_up(tD // 2, 128))
    while vmem_bytes(tM, tD) > budget and tM > 128:
        tM //= 2
    # TODO(synk): tile Ktot (class columns) as a third grid axis for very large K.

    M_pad = _round_up(M, tM)
    if M_pad // tM == 1 and tM % 32 == 0:
        tM //= 2                                      # >= 2 parallel M blocks (v7x 2 TCs)
        M_pad = _round_up(M, tM)
    D_pad = _round_up(D, tD)
    n_m, n_d = M_pad // tM, D_pad // tD

    # ---- crop matrix: cast to bf16 first, single fused pad -------------------------
    xb = x.astype(jnp.bfloat16)
    rows = jnp.concatenate(
        [xb[:, :, a:a + cs, c:c + cs].reshape(N, D) for (a, c) in crop_offsets],
        axis=0)                                       # (nc*N, D), crop-major rows
    crops = jnp.pad(rows, ((0, M_pad - M), (0, D_pad - D)))
    # TODO(synk): for large images, skip materializing the nc overlapping crops and
    # gather crop rows in-kernel from x (memory_space=pl.ANY + manual DMA).
    W_in = jnp.pad(W_eff, ((0, D_pad - D), (0, 0))).astype(jnp.bfloat16)
    b_in = b_eff.astype(jnp.float32)

    vmem_limit = int(min(cap * 9 // 10,
                         max(2 * vmem_bytes(tM, tD), 32 * 1024 * 1024)))

    if n_d == 1:
        kernel = functools.partial(_ensemble_kernel_1d, groups=groups)
        grid = (n_m,)
        in_specs = [
            pl.BlockSpec((tM, tD), lambda m: (m, 0)),     # crops (streamed over M)
            pl.BlockSpec((tD, Ktot), lambda m: (0, 0)),   # [W | W_flip] (resident)
            pl.BlockSpec((1, Ktot), lambda m: (0, 0)),    # bias (resident)
        ]
        out_specs = pl.BlockSpec((tM, Ktot), lambda m: (m, 0))
        dims = ("parallel",)
    else:
        kernel = functools.partial(_ensemble_kernel_2d, groups=groups, n_d=n_d)
        grid = (n_m, n_d)
        in_specs = [
            pl.BlockSpec((tM, tD), lambda m, d: (m, d)),
            pl.BlockSpec((tD, Ktot), lambda m, d: (d, 0)),
            pl.BlockSpec((1, Ktot), lambda m, d: (0, 0)),
        ]
        out_specs = pl.BlockSpec((tM, Ktot), lambda m, d: (m, 0))
        dims = ("parallel", "arbitrary")

    out = pl.pallas_call(
        kernel,
        out_shape=jax.ShapeDtypeStruct((M_pad, Ktot), jnp.float32),
        grid_spec=pltpu.PrefetchScalarGridSpec(
            num_scalar_prefetch=0,
            grid=grid,
            in_specs=in_specs,
            out_specs=out_specs,
        ),
        compiler_params=pltpu.CompilerParams(
            dimension_semantics=dims,
            vmem_limit_bytes=vmem_limit,
        ),
    )(crops, W_in, b_in)

    # ---- drop padding and average exactly like the PyTorch forward -----------------
    out = out[:M]
    lo0, hi0 = groups[0]
    p0 = out[:, lo0:hi0].reshape(nc, N, K)            # original-weight softmaxes
    unflip = jnp.sum(p0[:5], axis=0)                  # 5 original-image crops
    if not flipping:
        return unflip / 5.0
    lo1, hi1 = groups[1]
    p1 = out[:, lo1:hi1].reshape(nc, N, K)            # flipped-weight softmaxes
    if extra_center:
        flip = jnp.sum(p1[:4], axis=0) + p1[5]
    else:
        flip = jnp.sum(p1[:5], axis=0)
    return (unflip + flip) / 10.0


def _reference(x, W, b, cs, flipping):
    """Pure-JAX f32 reference with the exact PyTorch semantics."""
    N, C, H, Wd = x.shape
    x1, x2, cx = 0, H - cs, H // 2 - cs // 2
    y1, y2, cy = 0, Wd - cs, Wd // 2 - cs // 2
    b = b.reshape(1, -1)

    def run(img):
        logits = img.reshape(N, -1) @ W + b
        return jax.nn.softmax(logits, axis=1)

    offs = [(x1, y1), (x1, y2), (x2, y1), (x2, y2), (cx, cy)]
    y = sum(run(x[:, :, a:a + cs, c:c + cs]) for a, c in offs)
    if flipping:
        xf = x[:, :, :, ::-1]
        y = y + sum(run(xf[:, :, a:a + cs, c:c + cs]) for a, c in offs)
        return y / 10.0
    return y / 5.0


if __name__ == "__main__":
    N, C, H, Wd = 2, 4, 16, 16
    num_classes = 16

    key = jax.random.PRNGKey(0)
    kx, kw, kb = jax.random.split(key, 3)
    x = jax.random.normal(kx, (N, C, H, Wd), dtype=jnp.float32)

    # (cropsize, flipping, d_block_cap):
    #   cs=12: mirrored center coincides (resident 1-D grid path)
    #   cs=11: exercises the extra mirrored-center crop
    #   flipping=False path
    #   d_block_cap=256: forces D tiling -> accumulating 2-D grid kernel path
    configs = [(12, True, None), (11, True, None), (12, False, None), (12, True, 256)]

    for cropsize, flipping, d_cap in configs:
        D = C * cropsize * cropsize
        W = jax.random.normal(kw, (D, num_classes), dtype=jnp.float32) * 0.02
        b = jax.random.normal(kb, (1, num_classes), dtype=jnp.float32) * 0.01

        y = multicrop_ensemble(x, W, b, cropsize, flipping=flipping, d_block_cap=d_cap)
        y = jax.block_until_ready(y)
        y_ref = _reference(x, W, b, cropsize, flipping)

        assert y.shape == (N, num_classes)
        # output is an average of exactly-normalized softmaxes -> each row sums to ~1
        assert jnp.allclose(jnp.sum(y, axis=-1), jnp.ones((N,), jnp.float32),
                            atol=2e-3), (cropsize, flipping, d_cap)
        # match the f32 reference within bf16-matmul tolerance
        assert jnp.allclose(y, y_ref, atol=2e-2), (
            cropsize, flipping, d_cap, float(jnp.max(jnp.abs(y - y_ref))))

    print("KERNEL_OK")
</pallas_src>

<mosaic_0001>
module attributes {stable_mosaic.version = 11 : i64} {
  func.func @_ensemble_kernel_1d(%arg0: i32, %arg1: memref<16x640xbf16, #tpu.memory_space<vmem>>, %arg2: memref<640x128xbf16, #tpu.memory_space<vmem>>, %arg3: memref<1x128xf32, #tpu.memory_space<vmem>>, %arg4: memref<16x128xf32, #tpu.memory_space<vmem>>) attributes {dimension_semantics = [#tpu.dimension_semantics<parallel>], iteration_bounds = array<i64: 1>, scalar_prefetch = 0 : i64, scratch_operands = 0 : i64, tpu.core_type = #tpu.core_type<tc>, window_params = [{transform_indices = @transform_0, window_bounds = array<i64: 16, 640>}, {pipeline_mode = #tpu.pipeline_mode<synchronous>, transform_indices = @transform_1, window_bounds = array<i64: 640, 128>}, {pipeline_mode = #tpu.pipeline_mode<synchronous>, transform_indices = @transform_2, window_bounds = array<i64: 1, 128>}, {transform_indices = @transform_3, window_bounds = array<i64: 16, 128>}]} {
    %c0 = arith.constant 0 : index
    %c0_0 = arith.constant 0 : index
    %0 = vector.load %arg1[%c0, %c0_0] : memref<16x640xbf16, #tpu.memory_space<vmem>>, vector<16x640xbf16>
    %c0_1 = arith.constant 0 : index
    %c0_2 = arith.constant 0 : index
    %1 = vector.load %arg2[%c0_1, %c0_2] : memref<640x128xbf16, #tpu.memory_space<vmem>>, vector<640x128xbf16>
    %cst = arith.constant dense<0.000000e+00> : vector<16x128xf32>
    %2 = tpu.matmul %0, %1, %cst {dimension_numbers = #tpu.dot_dimension_numbers<[1], [0], [0], [1], [0, 0, 1, 1], [], []>} : vector<16x640xbf16>, vector<640x128xbf16>, vector<16x128xf32> -> vector<16x128xf32>
    %c0_3 = arith.constant 0 : index
    %c0_4 = arith.constant 0 : index
    %3 = vector.load %arg3[%c0_3, %c0_4] : memref<1x128xf32, #tpu.memory_space<vmem>>, vector<1x128xf32>
    %4 = vector.broadcast %3 : vector<1x128xf32> to vector<16x128xf32>
    %5 = arith.addf %2, %4 : vector<16x128xf32>
    %6 = tpu.iota {dimensions = array<i32: 1>} : vector<16x128xi32>
    %cst_5 = arith.constant 0.000000e+00 : f32
    %7 = vector.broadcast %cst_5 : f32 to vector<16x128xf32>
    %c0_i32 = arith.constant 0 : i32
    %8 = vector.broadcast %c0_i32 : i32 to vector<16x128xi32>
    %9 = arith.cmpi sge, %6, %8 : vector<16x128xi32>
    %c16_i32 = arith.constant 16 : i32
    %10 = vector.broadcast %c16_i32 : i32 to vector<16x128xi32>
    %11 = arith.cmpi slt, %6, %10 : vector<16x128xi32>
    %12 = arith.andi %9, %11 : vector<16x128xi1>
    %cst_6 = arith.constant -1.000000e+30 : f32
    %13 = vector.broadcast %cst_6 : f32 to vector<16x128xf32>
    %14 = arith.select %12, %5, %13 : vector<16x128xi1>, vector<16x128xf32>
    %cst_7 = arith.constant dense<0xFF800000> : vector<16xf32>
    %15 = vector.multi_reduction <maximumf>, %14, %cst_7 [1] : vector<16x128xf32> to vector<16xf32>
    %16 = vector.shape_cast %15 : vector<16xf32> to vector<16x1xf32>
    %17 = vector.broadcast %16 : vector<16x1xf32> to vector<16x128xf32>
    %18 = arith.subf %14, %17 : vector<16x128xf32>
    %19 = math.exp %18 : vector<16x128xf32>
    %cst_8 = arith.constant dense<0.000000e+00> : vector<16xf32>
    %20 = vector.multi_reduction <add>, %19, %cst_8 [1] : vector<16x128xf32> to vector<16xf32>
    %21 = vector.shape_cast %20 : vector<16xf32> to vector<16x1xf32>
    %22 = vector.broadcast %21 : vector<16x1xf32> to vector<16x128xf32>
    %23 = arith.divf %19, %22 : vector<16x128xf32>
    %24 = arith.select %12, %23, %7 : vector<16x128xi1>, vector<16x128xf32>
    %c16_i32_9 = arith.constant 16 : i32
    %25 = vector.broadcast %c16_i32_9 : i32 to vector<16x128xi32>
    %26 = arith.cmpi sge, %6, %25 : vector<16x128xi32>
    %c32_i32 = arith.constant 32 : i32
    %27 = vector.broadcast %c32_i32 : i32 to vector<16x128xi32>
    %28 = arith.cmpi slt, %6, %27 : vector<16x128xi32>
    %29 = arith.andi %26, %28 : vector<16x128xi1>
    %cst_10 = arith.constant -1.000000e+30 : f32
    %30 = vector.broadcast %cst_10 : f32 to vector<16x128xf32>
    %31 = arith.select %29, %5, %30 : vector<16x128xi1>, vector<16x128xf32>
    %cst_11 = arith.constant dense<0xFF800000> : vector<16xf32>
    %32 = vector.multi_reduction <maximumf>, %31, %cst_11 [1] : vector<16x128xf32> to vector<16xf32>
    %33 = vector.shape_cast %32 : vector<16xf32> to vector<16x1xf32>
    %34 = vector.broadcast %33 : vector<16x1xf32> to vector<16x128xf32>
    %35 = arith.subf %31, %34 : vector<16x128xf32>
    %36 = math.exp %35 : vector<16x128xf32>
    %cst_12 = arith.constant dense<0.000000e+00> : vector<16xf32>
    %37 = vector.multi_reduction <add>, %36, %cst_12 [1] : vector<16x128xf32> to vector<16xf32>
    %38 = vector.shape_cast %37 : vector<16xf32> to vector<16x1xf32>
    %39 = vector.broadcast %38 : vector<16x1xf32> to vector<16x128xf32>
    %40 = arith.divf %36, %39 : vector<16x128xf32>
    %41 = arith.select %29, %40, %24 : vector<16x128xi1>, vector<16x128xf32>
    %c0_13 = arith.constant 0 : index
    %c0_14 = arith.constant 0 : index
    %42 = vector.load %arg4[%c0_13, %c0_14] : memref<16x128xf32, #tpu.memory_space<vmem>>, vector<16x128xf32>
    tpu.vector_store %arg4[%c0_13, %c0_14], %41 {strides = array<i32>} : memref<16x128xf32, #tpu.memory_space<vmem>>, vector<16x128xf32>,
    return
  }
  func.func @transform_0(%arg0: i32) -> (i32, i32) {
    %c0_i32 = arith.constant 0 : i32
    %c0_i32_0 = arith.constant 0 : i32
    return %arg0, %c0_i32 : i32, i32
  }
  func.func @transform_1(%arg0: i32) -> (i32, i32) {
    %c0_i32 = arith.constant 0 : i32
    %c0_i32_0 = arith.constant 0 : i32
    %c0_i32_1 = arith.constant 0 : i32
    return %c0_i32, %c0_i32_0 : i32, i32
  }
  func.func @transform_2(%arg0: i32) -> (i32, i32) {
    %c0_i32 = arith.constant 0 : i32
    %c0_i32_0 = arith.constant 0 : i32
    %c0_i32_1 = arith.constant 0 : i32
    return %c0_i32, %c0_i32_0 : i32, i32
  }
  func.func @transform_3(%arg0: i32) -> (i32, i32) {
    %c0_i32 = arith.constant 0 : i32
    %c0_i32_0 = arith.constant 0 : i32
    return %arg0, %c0_i32 : i32, i32
  }
}

</mosaic_0001>

<llo_original>
// kernel: tpu_custom_call.1
$region0: #{tpu_custom_call.1}
  #allocation0 [shape = 'u32[]', space=smem, size = 0x4, offset = 0x4, fixed_abs, tag = 'smem constant byte address 0x4 - core index']
  #allocation1 [shape = 'u32[72,128]{1,0:T(1,128)}', space=vmem, size = 0x9000, scoped, tag = 'internal scratch']
  %s0 = inlined_call_operand.hbm [shape: bf16[16,640], index: 0, kind: input, shape index: {}]
  %s1 = inlined_call_operand.hbm [shape: bf16[640,128], index: 1, kind: input, shape index: {}]
  %s2 = inlined_call_operand.vmem [shape: f32[1,128], index: 2, kind: input, shape index: {}]
  %s3 = inlined_call_operand.hbm [shape: f32[16,128], index: 3, kind: output, shape index: {}]
  %s4 = sld [smem:[#allocation0]]
  $region30: #{tpu_custom_call.1} parent=0
    _
  %s6 = ssub.s32 1, %s4
  %s7 = scalar_select 0, %s6, %s4
  $region1: #{tpu_custom_call.1} parent=0
    #allocation2 [shape = 'u8[20480]{0}', space=vmem, size = 0x5000, scoped, tag = 'input window, operand 0, single buffered']
    #allocation3 [shape = 's32[1]{0}', space=sflag, size = 0x4, scoped, tag = 'scoped memory for tpu_custom_call.1']
    #allocation4 [shape = 's32[1]{0}', space=sflag, size = 0x4, scoped, tag = 'scoped memory for tpu_custom_call.1']
    #allocation5 [shape = 'u8[163840]{0}', space=vmem, size = 0x28000, scoped, tag = 'input window, operand 1, single buffered']
    #allocation6 [shape = 's32[1]{0}', space=sflag, size = 0x4, scoped, tag = 'scoped memory for tpu_custom_call.1']
    #allocation7 [shape = 'u8[8192]{0}', space=vmem, size = 0x2000, scoped, tag = 'output window, operand 0, single buffered']
    %8 = vsyncpa [#allocation3], 0
    %9 = vsyncpa [#allocation6], 0
    %10 = vsyncpa [#allocation4], 0
    // Predicated region
    $region2: #{tpu_custom_call.1} parent=1 // pred_check
      _
    $region3: #{tpu_custom_call.1} parent=1 // pred_check_branch
      %12 = sbr.rel (0) target = $region5
    $region4: #{tpu_custom_call.1} parent=1 // pred_region
      %14 = vsyncadd [#allocation3], 0
      %s15 = sshll.u32 %s0, 4
      %s16 = int_to_ptr.hbm [resolvable:$true] %s15
      %s17 = sshll.u32 [#allocation2], 4
      %s18 = int_to_ptr.vmem [resolvable:$true] %s17
      %23 = dma.hbm_to_vmem [thread:$0]  %s16, 640, %s18, [#allocation3], 320, 320, 20
    $region5: #{tpu_custom_call.1} parent=1 // pred_fallthru
      _
    // Predicated region
    $region6: #{tpu_custom_call.1} parent=1 // pred_check
      _
    $region7: #{tpu_custom_call.1} parent=1 // pred_check_branch
      %25 = sbr.rel (0) target = $region9
    $region8: #{tpu_custom_call.1} parent=1 // pred_region
      %27 = vsyncadd [#allocation6], 0
      %s28 = sshll.u32 %s1, 4
      %s29 = int_to_ptr.hbm [resolvable:$true] %s28
      %s30 = sshll.u32 [#allocation5], 4
      %s31 = int_to_ptr.vmem [resolvable:$true] %s30
      %36 = dma.hbm_to_vmem [thread:$0]  %s29, 5120, %s31, [#allocation6], 64, 64, 4
    $region9: #{tpu_custom_call.1} parent=1 // pred_fallthru
      _
    // Predicated region
    $region10: #{tpu_custom_call.1} parent=1 // pred_check
      _
    $region11: #{tpu_custom_call.1} parent=1 // pred_check_branch
      %38 = sbr.rel (0) target = $region13
    $region12: #{tpu_custom_call.1} parent=1 // pred_region
      _
    $region13: #{tpu_custom_call.1} parent=1 // pred_fallthru
      _
    // Predicated region
    $region14: #{tpu_custom_call.1} parent=1 // pred_check
      _
    $region15: #{tpu_custom_call.1} parent=1 // pred_check_branch
      %40 = sbr.rel (0) target = $region17
    $region16: #{tpu_custom_call.1} parent=1 // pred_region
      %42 = dma.done [#allocation3], 640
    $region17: #{tpu_custom_call.1} parent=1 // pred_fallthru
      _
    // Predicated region
    $region18: #{tpu_custom_call.1} parent=1 // pred_check
      _
    $region19: #{tpu_custom_call.1} parent=1 // pred_check_branch
      %44 = sbr.rel (0) target = $region21
    $region20: #{tpu_custom_call.1} parent=1 // pred_region
      %46 = dma.done [#allocation6], 5120
    $region21: #{tpu_custom_call.1} parent=1 // pred_fallthru
      _
    %v47 = vld [vmem:[#allocation2] sm:$0xff]
    %v48 = vld [vmem:[#allocation2 + $0x8] sm:$0xff]
    %v49 = vld [vmem:[#allocation2 + $0x10] sm:$0xf]
    %v50 = vld [vmem:[#allocation2 + $0x14] sm:$0xff]
    %v51 = vld [vmem:[#allocation2 + $0x1c] sm:$0xff]
    %v52 = vld [vmem:[#allocation2 + $0x24] sm:$0xf]
    %v53 = vld [vmem:[#allocation5] sm:$0xf]
    %v54 = vld [vmem:[#allocation5 + $0x4] sm:$0xf]
    %v55 = vld [vmem:[#allocation5 + $0x8] sm:$0xf]
    %v56 = vld [vmem:[#allocation5 + $0xc] sm:$0xf]
    %v57 = vld [vmem:[#allocation5 + $0x10] sm:$0xf]
    %v58 = vld [vmem:[#allocation5 + $0x14] sm:$0xf]
    %v59 = vld [vmem:[#allocation5 + $0x18] sm:$0xf]
    %v60 = vld [vmem:[#allocation5 + $0x1c] sm:$0xf]
    %v61 = vld [vmem:[#allocation5 + $0x20] sm:$0xf]
    %v62 = vld [vmem:[#allocation5 + $0x24] sm:$0xf]
    %v63 = vld [vmem:[#allocation5 + $0x28] sm:$0xf]
    %v64 = vld [vmem:[#allocation5 + $0x2c] sm:$0xf]
    %v65 = vld [vmem:[#allocation5 + $0x30] sm:$0xf]
    %v66 = vld [vmem:[#allocation5 + $0x34] sm:$0xf]
    %v67 = vld [vmem:[#allocation5 + $0x38] sm:$0xf]
    %v68 = vld [vmem:[#allocation5 + $0x3c] sm:$0xf]
    %v69 = vld [vmem:[#allocation5 + $0x40] sm:$0xf]
    %v70 = vld [vmem:[#allocation5 + $0x44] sm:$0xf]
    %v71 = vld [vmem:[#allocation5 + $0x48] sm:$0xf]
    %v72 = vld [vmem:[#allocation5 + $0x4c] sm:$0xf]
    %v73 = vld [vmem:[#allocation5 + $0x50] sm:$0xf]
    %v74 = vld [vmem:[#allocation5 + $0x54] sm:$0xf]
    %v75 = vld [vmem:[#allocation5 + $0x58] sm:$0xf]
    %v76 = vld [vmem:[#allocation5 + $0x5c] sm:$0xf]
    %v77 = vld [vmem:[#allocation5 + $0x60] sm:$0xf]
    %v78 = vld [vmem:[#allocation5 + $0x64] sm:$0xf]
    %v79 = vld [vmem:[#allocation5 + $0x68] sm:$0xf]
    %v80 = vld [vmem:[#allocation5 + $0x6c] sm:$0xf]
    %v81 = vld [vmem:[#allocation5 + $0x70] sm:$0xf]
    %v82 = vld [vmem:[#allocation5 + $0x74] sm:$0xf]
    %v83 = vld [vmem:[#allocation5 + $0x78] sm:$0xf]
    %v84 = vld [vmem:[#allocation5 + $0x7c] sm:$0xf]
    %v85 = vld [vmem:[#allocation5 + $0x80] sm:$0xf]
    %v86 = vld [vmem:[#allocation5 + $0x84] sm:$0xf]
    %v87 = vld [vmem:[#allocation5 + $0x88] sm:$0xf]
    %v88 = vld [vmem:[#allocation5 + $0x8c] sm:$0xf]
    %v89 = vld [vmem:[#allocation5 + $0x90] sm:$0xf]
    %v90 = vld [vmem:[#allocation5 + $0x94] sm:$0xf]
    %v91 = vld [vmem:[#allocation5 + $0x98] sm:$0xf]
    %v92 = vld [vmem:[#allocation5 + $0x9c] sm:$0xf]
    %v93 = vld [vmem:[#allocation5 + $0xa0] sm:$0xf]
    %v94 = vld [vmem:[#allocation5 + $0xa4] sm:$0xf]
    %v95 = vld [vmem:[#allocation5 + $0xa8] sm:$0xf]
    %v96 = vld [vmem:[#allocation5 + $0xac] sm:$0xf]
    %v97 = vld [vmem:[#allocation5 + $0xb0] sm:$0xf]
    %v98 = vld [vmem:[#allocation5 + $0xb4] sm:$0xf]
    %v99 = vld [vmem:[#allocation5 + $0xb8] sm:$0xf]
    %v100 = vld [vmem:[#allocation5 + $0xbc] sm:$0xf]
    %v101 = vld [vmem:[#allocation5 + $0xc0] sm:$0xf]
    %v102 = vld [vmem:[#allocation5 + $0xc4] sm:$0xf]
    %v103 = vld [vmem:[#allocation5 + $0xc8] sm:$0xf]
    %v104 = vld [vmem:[#allocation5 + $0xcc] sm:$0xf]
    %v105 = vld [vmem:[#allocation5 + $0xd0] sm:$0xf]
    %v106 = vld [vmem:[#allocation5 + $0xd4] sm:$0xf]
    %v107 = vld [vmem:[#allocation5 + $0xd8] sm:$0xf]
    %v108 = vld [vmem:[#allocation5 + $0xdc] sm:$0xf]
    %v109 = vld [vmem:[#allocation5 + $0xe0] sm:$0xf]
    %v110 = vld [vmem:[#allocation5 + $0xe4] sm:$0xf]
    %v111 = vld [vmem:[#allocation5 + $0xe8] sm:$0xf]
    %v112 = vld [vmem:[#allocation5 + $0xec] sm:$0xf]
    %v113 = vld [vmem:[#allocation5 + $0xf0] sm:$0xf]
    %v114 = vld [vmem:[#allocation5 + $0xf4] sm:$0xf]
    %v115 = vld [vmem:[#allocation5 + $0xf8] sm:$0xf]
    %v116 = vld [vmem:[#allocation5 + $0xfc] sm:$0xf]
    %v117 = vld [vmem:[#allocation5 + $0x100] sm:$0xf]
    %v118 = vld [vmem:[#allocation5 + $0x104] sm:$0xf]
    %v119 = vld [vmem:[#allocation5 + $0x108] sm:$0xf]
    %v120 = vld [vmem:[#allocation5 + $0x10c] sm:$0xf]
    %v121 = vld [vmem:[#allocation5 + $0x110] sm:$0xf]
    %v122 = vld [vmem:[#allocation5 + $0x114] sm:$0xf]
    %v123 = vld [vmem:[#allocation5 + $0x118] sm:$0xf]
    %v124 = vld [vmem:[#allocation5 + $0x11c] sm:$0xf]
    %v125 = vld [vmem:[#allocation5 + $0x120] sm:$0xf]
    %v126 = vld [vmem:[#allocation5 + $0x124] sm:$0xf]
    %v127 = vld [vmem:[#allocation5 + $0x128] sm:$0xf]
    %v128 = vld [vmem:[#allocation5 + $0x12c] sm:$0xf]
    %v129 = vld [vmem:[#allocation5 + $0x130] sm:$0xf]
    %v130 = vld [vmem:[#allocation5 + $0x134] sm:$0xf]
    %v131 = vld [vmem:[#allocation5 + $0x138] sm:$0xf]
    %v132 = vld [vmem:[#allocation5 + $0x13c] sm:$0xf]
    %v133 = vld [vmem:[%s2] sm:$0x1]
    %v135 = vperm.slane %v133, 0
    %v143 = vunpack.c.l.b16 %v47
    %v144 = vunpack.c.h.b16 %v47
    %v145 = vunpack.c.l.b16 %v48
    %v146 = vunpack.c.h.b16 %v48
    %v147 = vunpack.c.l.b16 %v49
    %v148 = vunpack.c.l.b16 %v50
    %v149 = vunpack.c.h.b16 %v50
    %v150 = vunpack.c.l.b16 %v51
    %v151 = vunpack.c.h.b16 %v51
    %v152 = vunpack.c.l.b16 %v52
    %v153 = vpack.c.b16 %v148, %v143
    %v154 = vpack.c.b16 %v149, %v144
    %v155 = vpack.c.b16 %v150, %v145
    %v156 = vpack.c.b16 %v151, %v146
    %v157 = vpack.c.b16 %v152, %v147
    %v243 = vunpack.c.l.b16 %v53
    %v244 = vunpack.c.l.b16 %v54
    %v245 = vunpack.c.l.b16 %v55
    %v246 = vunpack.c.l.b16 %v56
    %v247 = vunpack.c.l.b16 %v57
    %v248 = vunpack.c.l.b16 %v58
    %v249 = vunpack.c.l.b16 %v59
    %v250 = vunpack.c.l.b16 %v60
    %v251 = vunpack.c.l.b16 %v61
    %v252 = vunpack.c.l.b16 %v62
    %v253 = vunpack.c.l.b16 %v63
    %v254 = vunpack.c.l.b16 %v64
    %v255 = vunpack.c.l.b16 %v65
    %v256 = vunpack.c.l.b16 %v66
    %v257 = vunpack.c.l.b16 %v67
    %v258 = vunpack.c.l.b16 %v68
    %v259 = vunpack.c.l.b16 %v69
    %v260 = vunpack.c.l.b16 %v70
    %v261 = vunpack.c.l.b16 %v71
    %v262 = vunpack.c.l.b16 %v72
    %v263 = vunpack.c.l.b16 %v73
    %v264 = vunpack.c.l.b16 %v74
    %v265 = vunpack.c.l.b16 %v75
    %v266 = vunpack.c.l.b16 %v76
    %v267 = vunpack.c.l.b16 %v77
    %v268 = vunpack.c.l.b16 %v78
    %v269 = vunpack.c.l.b16 %v79
    %v270 = vunpack.c.l.b16 %v80
    %v271 = vunpack.c.l.b16 %v81
    %v272 = vunpack.c.l.b16 %v82
    %v273 = vunpack.c.l.b16 %v83
    %v274 = vunpack.c.l.b16 %v84
    %v275 = vunpack.c.l.b16 %v85
    %v276 = vunpack.c.l.b16 %v86
    %v277 = vunpack.c.l.b16 %v87
    %v278 = vunpack.c.l.b16 %v88
    %v279 = vunpack.c.l.b16 %v89
    %v280 = vunpack.c.l.b16 %v90
    %v281 = vunpack.c.l.b16 %v91
    %v282 = vunpack.c.l.b16 %v92
    %v283 = vunpack.c.l.b16 %v93
    %v284 = vunpack.c.l.b16 %v94
    %v285 = vunpack.c.l.b16 %v95
    %v286 = vunpack.c.l.b16 %v96
    %v287 = vunpack.c.l.b16 %v97
    %v288 = vunpack.c.l.b16 %v98
    %v289 = vunpack.c.l.b16 %v99
    %v290 = vunpack.c.l.b16 %v100
    %v291 = vunpack.c.l.b16 %v101
    %v292 = vunpack.c.l.b16 %v102
    %v293 = vunpack.c.l.b16 %v103
    %v294 = vunpack.c.l.b16 %v104
    %v295 = vunpack.c.l.b16 %v105
    %v296 = vunpack.c.l.b16 %v106
    %v297 = vunpack.c.l.b16 %v107
    %v298 = vunpack.c.l.b16 %v108
    %v299 = vunpack.c.l.b16 %v109
    %v300 = vunpack.c.l.b16 %v110
    %v301 = vunpack.c.l.b16 %v111
    %v302 = vunpack.c.l.b16 %v112
    %v303 = vunpack.c.l.b16 %v113
    %v304 = vunpack.c.l.b16 %v114
    %v305 = vunpack.c.l.b16 %v115
    %v306 = vunpack.c.l.b16 %v116
    %v307 = vunpack.c.l.b16 %v117
    %v308 = vunpack.c.l.b16 %v118
    %v309 = vunpack.c.l.b16 %v119
    %v310 = vunpack.c.l.b16 %v120
    %v311 = vunpack.c.l.b16 %v121
    %v312 = vunpack.c.l.b16 %v122
    %v313 = vunpack.c.l.b16 %v123
    %v314 = vunpack.c.l.b16 %v124
    %v315 = vunpack.c.l.b16 %v125
    %v316 = vunpack.c.l.b16 %v126
    %v317 = vunpack.c.l.b16 %v127
    %v318 = vunpack.c.l.b16 %v128
    %v319 = vunpack.c.l.b16 %v129
    %v320 = vunpack.c.l.b16 %v130
    %v321 = vunpack.c.l.b16 %v131
    %v322 = vunpack.c.l.b16 %v132
    %v323 = vpack.c.b16 %v244, %v243
    %v324 = vpack.c.b16 %v246, %v245
    %v325 = vpack.c.b16 %v248, %v247
    %v326 = vpack.c.b16 %v250, %v249
    %v327 = vpack.c.b16 %v252, %v251
    %v328 = vpack.c.b16 %v254, %v253
    %v329 = vpack.c.b16 %v256, %v255
    %v330 = vpack.c.b16 %v258, %v257
    %v331 = vpack.c.b16 %v260, %v259
    %v332 = vpack.c.b16 %v262, %v261
    %v333 = vpack.c.b16 %v264, %v263
    %v334 = vpack.c.b16 %v266, %v265
    %v335 = vpack.c.b16 %v268, %v267
    %v336 = vpack.c.b16 %v270, %v269
    %v337 = vpack.c.b16 %v272, %v271
    %v338 = vpack.c.b16 %v274, %v273
    %v339 = vpack.c.b16 %v276, %v275
    %v340 = vpack.c.b16 %v278, %v277
    %v341 = vpack.c.b16 %v280, %v279
    %v342 = vpack.c.b16 %v282, %v281
    %v343 = vpack.c.b16 %v284, %v283
    %v344 = vpack.c.b16 %v286, %v285
    %v345 = vpack.c.b16 %v288, %v287
    %v346 = vpack.c.b16 %v290, %v289
    %v347 = vpack.c.b16 %v292, %v291
    %v348 = vpack.c.b16 %v294, %v293
    %v349 = vpack.c.b16 %v296, %v295
    %v350 = vpack.c.b16 %v298, %v297
    %v351 = vpack.c.b16 %v300, %v299
    %v352 = vpack.c.b16 %v302, %v301
    %v353 = vpack.c.b16 %v304, %v303
    %v354 = vpack.c.b16 %v306, %v305
    %v355 = vpack.c.b16 %v308, %v307
    %v356 = vpack.c.b16 %v310, %v309
    %v357 = vpack.c.b16 %v312, %v311
    %v358 = vpack.c.b16 %v314, %v313
    %v359 = vpack.c.b16 %v316, %v315
    %v360 = vpack.c.b16 %v318, %v317
    %v361 = vpack.c.b16 %v320, %v319
    %v362 = vpack.c.b16 %v322, %v321
    %403 = vmatpush.bf16.msra.mxu0 %v330
    %404 = vmatpush.bf16.msra.mxu0 %v329
    %405 = vmatpush.bf16.msra.mxu0 %v328
    %406 = vmatpush.bf16.msra.mxu0 %v327
    %407 = vmatpush.bf16.msra.mxu0 %v326
    %408 = vmatpush.bf16.msra.mxu0 %v325
    %409 = vmatpush.bf16.msra.mxu0 %v324
    %410 = vmatpush.bf16.msra.mxu0 %v323
    %411 = vmatmul.bf16.gmra.mxu0 %v153
    %v412 = vpop.f32.mrf.mxu0
    %v413 = vadd.f32 %v135, %v412
    %v414 = vpop.f32.mrf.mxu0
    %v415 = vadd.f32 %v135, %v414
    %416 = vdwg.mxu0
    %417 = vmatpush.bf16.msra.mxu0 %v338
    %418 = vmatpush.bf16.msra.mxu0 %v337
    %419 = vmatpush.bf16.msra.mxu0 %v336
    %420 = vmatpush.bf16.msra.mxu0 %v335
    %421 = vmatpush.bf16.msra.mxu0 %v334
    %422 = vmatpush.bf16.msra.mxu0 %v333
    %423 = vmatpush.bf16.msra.mxu0 %v332
    %424 = vmatpush.bf16.msra.mxu0 %v331
    %425 = vmatmul.bf16.gmra.mxu0 %v154
    %v426 = vpop.f32.mrf.mxu0
    %v427 = vadd.f32 %v413, %v426
    %v428 = vpop.f32.mrf.mxu0
    %v429 = vadd.f32 %v415, %v428
    %430 = vdwg.mxu0
    %431 = vmatpush.bf16.msra.mxu0 %v346
    %432 = vmatpush.bf16.msra.mxu0 %v345
    %433 = vmatpush.bf16.msra.mxu0 %v344
    %434 = vmatpush.bf16.msra.mxu0 %v343
    %435 = vmatpush.bf16.msra.mxu0 %v342
    %436 = vmatpush.bf16.msra.mxu0 %v341
    %437 = vmatpush.bf16.msra.mxu0 %v340
    %438 = vmatpush.bf16.msra.mxu0 %v339
    %439 = vmatmul.bf16.gmra.mxu0 %v155
    %v440 = vpop.f32.mrf.mxu0
    %v441 = vadd.f32 %v427, %v440
    %v442 = vpop.f32.mrf.mxu0
    %v443 = vadd.f32 %v429, %v442
    %444 = vdwg.mxu0
    %445 = vmatpush.bf16.msra.mxu0 %v354
    %446 = vmatpush.bf16.msra.mxu0 %v353
    %447 = vmatpush.bf16.msra.mxu0 %v352
    %448 = vmatpush.bf16.msra.mxu0 %v351
    %449 = vmatpush.bf16.msra.mxu0 %v350
    %450 = vmatpush.bf16.msra.mxu0 %v349
    %451 = vmatpush.bf16.msra.mxu0 %v348
    %452 = vmatpush.bf16.msra.mxu0 %v347
    %453 = vmatmul.bf16.gmra.mxu0 %v156
    %v454 = vpop.f32.mrf.mxu0
    %v455 = vadd.f32 %v441, %v454
    %v456 = vpop.f32.mrf.mxu0
    %v457 = vadd.f32 %v443, %v456
    %458 = vdwg.mxu0
    %459 = vmatpush.bf16.msra.mxu0 %v362
    %460 = vmatpush.bf16.msra.mxu0 %v361
    %461 = vmatpush.bf16.msra.mxu0 %v360
    %462 = vmatpush.bf16.msra.mxu0 %v359
    %463 = vmatpush.bf16.msra.mxu0 %v358
    %464 = vmatpush.bf16.msra.mxu0 %v357
    %465 = vmatpush.bf16.msra.mxu0 %v356
    %466 = vmatpush.bf16.msra.mxu0 %v355
    %467 = vmatmul.bf16.gmra.mxu0 %v157
    %v468 = vpop.f32.mrf.mxu0
    %v469 = vadd.f32 %v455, %v468
    %v470 = vpop.f32.mrf.mxu0
    %v471 = vadd.f32 %v457, %v470
    %472 = vdwg.mxu0
    %v473 = vlaneseq
    %v474 = vand.u32 %v473, 127
    %vm475 = vcmp.ge.s32.totalorder %v474, 0
    %vm476 = vcmp.lt.s32.totalorder %v474, 16
    %vm477 = vmand %vm475, %vm476
    %v478 = vsel %vm477, %v469, -1e+30
    %v479 = vsel %vm477, %v471, -1e+30
    %480 = vmax.xlane.f32.xlu0 %v478
    %v481 = vpop.xlane.xlu0 %480
    %482 = vmax.xlane.f32.xlu0 %v479
    %v483 = vpop.xlane.xlu0 %482
    %v484 = vsub.f32 %v478, %v481
    %v485 = vsub.f32 %v479, %v483
    %v486 = vmul.f32 %v484, 1.442695
    %v487 = vpow.pop %v486
    %v488 = vmul.f32 %v485, 1.442695
    %v489 = vpow.pop %v488
    %490 = vadd.xlane.f32.xlu0 %v487
    %v491 = vpop.xlane.xlu0 %490
    %492 = vadd.xlane.f32.xlu0 %v489
    %v493 = vpop.xlane.xlu0 %492
    %v494 = vrcp.pop %v491
    %v495 = vmul.f32 %v491, %v494
    %v496 = vsub.f32 1.0, %v495
    %v497 = vmul.f32 %v494, %v496
    %v498 = vadd.f32 %v494, %v497
    %vm499 = vweird.f32 %v491
    %vm500 = vweird.f32 %v494
    %vm501 = vmor %vm499, %vm500
    %v502 = vsel %vm501, %v494, %v498
    %v503 = vand.u32 2147483647, %v491
    %vm504 = vcmp.eq.f32.partialorder %v503, 8.507059e+37
    %v505 = vand.u32 %v491, 2147483648
    %v506 = vor.u32 1.1754944e-38, %v505
    %v507 = vsel %vm504, %v506, %v502
    %v508 = vmul.f32 %v487, %v507
    %v509 = vrcp.pop %v493
    %v510 = vmul.f32 %v493, %v509
    %v511 = vsub.f32 1.0, %v510
    %v512 = vmul.f32 %v509, %v511
    %v513 = vadd.f32 %v509, %v512
    %vm514 = vweird.f32 %v493
    %vm515 = vweird.f32 %v509
    %vm516 = vmor %vm514, %vm515
    %v517 = vsel %vm516, %v509, %v513
    %v518 = vand.u32 2147483647, %v493
    %vm519 = vcmp.eq.f32.partialorder %v518, 8.507059e+37
    %v520 = vand.u32 %v493, 2147483648
    %v521 = vor.u32 1.1754944e-38, %v520
    %v522 = vsel %vm519, %v521, %v517
    %v523 = vmul.f32 %v489, %v522
    %v524 = vsel %vm477, %v508, 0.0
    %v525 = vsel %vm477, %v523, 0.0
    %vm526 = vcmp.ge.s32.totalorder %v474, 16
    %vm527 = vcmp.lt.s32.totalorder %v474, 32
    %vm528 = vmand %vm526, %vm527
    %v529 = vsel %vm528, %v469, -1e+30
    %v530 = vsel %vm528, %v471, -1e+30
    %531 = vmax.xlane.f32.xlu0 %v529
    %v532 = vpop.xlane.xlu0 %531
    %533 = vmax.xlane.f32.xlu0 %v530
    %v534 = vpop.xlane.xlu0 %533
    %v535 = vsub.f32 %v529, %v532
    %v536 = vsub.f32 %v530, %v534
    %v537 = vmul.f32 %v535, 1.442695
    %v538 = vpow.pop %v537
    %v539 = vmul.f32 %v536, 1.442695
    %v540 = vpow.pop %v539
    %541 = vadd.xlane.f32.xlu0 %v538
    %v542 = vpop.xlane.xlu0 %541
    %543 = vadd.xlane.f32.xlu0 %v540
    %v544 = vpop.xlane.xlu0 %543
    %v545 = vrcp.pop %v542
    %v546 = vmul.f32 %v542, %v545
    %v547 = vsub.f32 1.0, %v546
    %v548 = vmul.f32 %v545, %v547
    %v549 = vadd.f32 %v545, %v548
    %vm550 = vweird.f32 %v542
    %vm551 = vweird.f32 %v545
    %vm552 = vmor %vm550, %vm551
    %v553 = vsel %vm552, %v545, %v549
    %v554 = vand.u32 2147483647, %v542
    %vm555 = vcmp.eq.f32.partialorder %v554, 8.507059e+37
    %v556 = vand.u32 %v542, 2147483648
    %v557 = vor.u32 1.1754944e-38, %v556
    %v558 = vsel %vm555, %v557, %v553
    %v559 = vmul.f32 %v538, %v558
    %v560 = vrcp.pop %v544
    %v561 = vmul.f32 %v544, %v560
    %v562 = vsub.f32 1.0, %v561
    %v563 = vmul.f32 %v560, %v562
    %v564 = vadd.f32 %v560, %v563
    %vm565 = vweird.f32 %v544
    %vm566 = vweird.f32 %v560
    %vm567 = vmor %vm565, %vm566
    %v568 = vsel %vm567, %v560, %v564
    %v569 = vand.u32 2147483647, %v544
    %vm570 = vcmp.eq.f32.partialorder %v569, 8.507059e+37
    %v571 = vand.u32 %v544, 2147483648
    %v572 = vor.u32 1.1754944e-38, %v571
    %v573 = vsel %vm570, %v572, %v568
    %v574 = vmul.f32 %v540, %v573
    %v575 = vsel %vm528, %v559, %v524
    %v576 = vsel %vm528, %v574, %v525
    %577 = vst [vmem:[#allocation7] sm:$0xff] %v575
    %578 = vst [vmem:[#allocation7 + $0x8] sm:$0xff] %v576
    // Predicated region
    $region22: #{tpu_custom_call.1} parent=1 // pred_check
      _
    $region23: #{tpu_custom_call.1} parent=1 // pred_check_branch
      %580 = sbr.rel (0) target = $region25
    $region24: #{tpu_custom_call.1} parent=1 // pred_region
      %582 = vsyncadd [#allocation4], 0
      %s583 = sshll.u32 [#allocation7], 4
      %s584 = int_to_ptr.vmem [resolvable:$true] %s583
      %s585 = sshll.u32 %s3, 4
      %s586 = int_to_ptr.hbm [resolvable:$true] %s585
      %591 = dma.vmem_to_hbm [thread:$0]  %s584, 256, %s586, [#allocation4], 128, 128, 8
    $region25: #{tpu_custom_call.1} parent=1 // pred_fallthru
      _
    // Predicated region
    $region26: #{tpu_custom_call.1} parent=1 // pred_check
      _
    $region27: #{tpu_custom_call.1} parent=1 // pred_check_branch
      %593 = sbr.rel (0) target = $region29
    $region28: #{tpu_custom_call.1} parent=1 // pred_region
      %595 = dma.done [#allocation4], 256
    $region29: #{tpu_custom_call.1} parent=1 // pred_fallthru
      _
    %596 = vsyncpa [#allocation3], 1
    %597 = vsyncpa [#allocation6], 1
    %598 = vsyncpa [#allocation4], 1

</llo_original>
